<compile_context>
chip_gen: v5e
topology: v5e:2x2
jax: 0.10.0
libtpu: 0.0.40
codegen_flags: <defaults>
</compile_context>

<pallas_src>
from typing import NamedTuple

import jax
import jax.numpy as jnp
from jax.experimental import pallas as pl
from jax.experimental.pallas import tpu as pltpu


# ---------------------------------------------------------------------------
# Helpers
# ---------------------------------------------------------------------------

def _round_up(x, n):
    return ((x + n - 1) // n) * n


def _hw_config():
    """Query the TPU generation and derive VMEM budget / tile caps."""
    vmem_cap = None
    align = 128
    try:
        info = pltpu.get_tpu_info()
        vmem_cap = getattr(info, "vmem_capacity_bytes", None)
        mxu = (getattr(info, "mxu_column_count", None)
               or getattr(info, "mxu_contracting_size", None))
        if mxu and int(mxu) >= 256:
            align = 256            # v6e/v7x: 256-wide MXU
    except Exception:
        pass
    if not vmem_cap:
        vmem_cap = 64 * 1024 * 1024          # conservative fallback: v7x per-TC VMEM
    budget = int(vmem_cap * 0.70)            # what we plan tiles against
    vmem_limit = int(vmem_cap * 0.875)       # explicit scoped-VMEM limit
    tm_cap = 1024 if vmem_cap >= 96 * 1024 * 1024 else 512   # v5e/v6e vs v7x
    return dict(vmem_cap=vmem_cap, budget=budget, vmem_limit=vmem_limit,
                tm_cap=tm_cap, align=align)


def _align_dim(d, align):
    # 256-align on wide-MXU chips only when the dim is already >= 256; otherwise
    # 128-alignment wastes less zero-compute.  128 is always lane-correct.
    base = align if d >= align else 128
    return _round_up(d, base)


def _weight_spec(shape, index_map):
    """Resident (constant index_map) operand: single-buffer to halve its VMEM.

    Falls back to default double-buffering if this jax has no pipeline_mode.
    """
    try:
        return pl.BlockSpec(shape, index_map, pipeline_mode=pl.Buffered(1))
    except TypeError:
        return pl.BlockSpec(shape, index_map)


# ---------------------------------------------------------------------------
# Kernels
# ---------------------------------------------------------------------------

def _mlp_kernel_resident(x_ref, w1_ref, b1_ref, w2_ref, b2_ref, o_ref):
    # x_ref: (tm, in_p) f32/bf16 | w1: (in_p, hid_p) bf16 | b1: (1, hid_p) f32
    # w2: (hid_p, out_p) bf16    | b2: (1, out_p) f32     | o_ref: (tm, out_p)
    x = x_ref[...].astype(jnp.bfloat16)                      # in-register cast
    h = jnp.dot(x, w1_ref[...], preferred_element_type=jnp.float32)   # MXU
    h = h + b1_ref[...]                                      # VPU (f32)
    h = h * jax.nn.sigmoid(h)                                # SiLU (EUP sigmoid)
    # Dropout(p=0.1): inference-mode identity.
    # TODO(synk): training-mode dropout (mask + 1/(1-p)) would use
    #             pltpu.prng_seed / pltpu.prng_random_bits with an explicit seed.
    y = jnp.dot(h.astype(jnp.bfloat16), w2_ref[...],
                preferred_element_type=jnp.float32)          # MXU
    o_ref[...] = (y + b2_ref[...]).astype(o_ref.dtype)


def _mlp_kernel_ktiled(x_ref, w1_ref, b1_ref, w2_ref, b2_ref, o_ref, acc_ref):
    # Hidden dim is tiled: grid = (M_tiles, H_tiles), H innermost ("arbitrary").
    hi = pl.program_id(1)

    @pl.when(hi == 0)
    def _():
        acc_ref[...] = jnp.zeros_like(acc_ref)

    x = x_ref[...].astype(jnp.bfloat16)
    h = jnp.dot(x, w1_ref[...], preferred_element_type=jnp.float32)
    h = h + b1_ref[...]
    h = h * jax.nn.sigmoid(h)
    # TODO(synk): training-mode dropout would be applied to `h` here.
    acc_ref[...] += jnp.dot(h.astype(jnp.bfloat16), w2_ref[...],
                            preferred_element_type=jnp.float32)

    @pl.when(hi == pl.num_programs(1) - 1)
    def _():
        o_ref[...] = (acc_ref[...] + b2_ref[...]).astype(o_ref.dtype)


# ---------------------------------------------------------------------------
# Tile-size selection
# ---------------------------------------------------------------------------

def _choose_th(in_p, out_p, cfg):
    """Hidden-dim tile for the K-tiled path (weight tiles are double-buffered)."""
    th = cfg["align"]
    while th * 2 <= 2048 and 2 * 2 * (th * 2) * (in_p + out_p) <= cfg["budget"] // 3:
        th *= 2
    return th


def _choose_tm_resident(in_p, hid_p, out_p, x_bytes, out_bytes, cfg):
    # Resident weights are single-buffered (pl.Buffered(1)); biases in f32.
    fixed = 2 * hid_p * (in_p + out_p) + 4 * (hid_p + out_p)
    per_row = (2 * x_bytes * in_p      # x tile (double-buffered)
               + 2 * in_p              # in-kernel bf16 copy of x
               + 2 * out_bytes * out_p # out tile (double-buffered)
               + 4 * hid_p + 2 * hid_p # f32 intermediate + bf16 cast
               + 4 * out_p)            # f32 pre-store value
    tm = (cfg["budget"] - fixed) // max(per_row, 1)
    return max(8, min(cfg["tm_cap"], (tm // 8) * 8))


def _choose_tm_ktiled(in_p, th, out_p, x_bytes, out_bytes, cfg):
    # Weight hidden-tiles change each grid step -> double-buffered bf16.
    fixed = 2 * 2 * th * (in_p + out_p) + 2 * 4 * th + 4 * out_p
    per_row = (2 * x_bytes * in_p + 2 * in_p
               + 2 * out_bytes * out_p
               + 4 * out_p                  # f32 accumulator scratch
               + 4 * th + 2 * th)           # f32 intermediate + bf16 cast
    tm = (cfg["budget"] - fixed) // max(per_row, 1)
    return max(8, min(cfg["tm_cap"], (tm // 8) * 8))


# ---------------------------------------------------------------------------
# Wrapper API
# ---------------------------------------------------------------------------

class MLPParams(NamedTuple):
    w1: jax.Array      # (in_p, hid_p)  bf16
    b1: jax.Array      # (1, hid_p)     f32
    w2: jax.Array      # (hid_p, out_p) bf16
    b2: jax.Array      # (1, out_p)     f32
    in_dim: int
    hidden_dim: int
    out_dim: int
    in_p: int
    hid_p: int
    out_p: int
    th: int            # hidden tile (== hid_p when resident)
    ktiled: bool


def mlp_prepare(w1, b1, w2, b2, cfg=None):
    """Pad + cast weights ONCE (hoisted out of the per-call hot path)."""
    if cfg is None:
        cfg = _hw_config()
    in_dim, hidden_dim = w1.shape
    out_dim = w2.shape[1]
    in_p = _round_up(in_dim, 128)
    out_p = _align_dim(out_dim, cfg["align"])
    hid_p = _align_dim(hidden_dim, cfg["align"])

    # Resident bf16 weights vs. hidden-dim-tiled path.
    resident_bytes = 2 * hid_p * (in_p + out_p)
    ktiled = resident_bytes > (6 * cfg["budget"]) // 10
    if ktiled:
        th = _choose_th(in_p, out_p, cfg)
        hid_p = _round_up(hidden_dim, th)
    else:
        th = hid_p

    # Zero padding keeps the math exact (padded hidden columns give SiLU(0)=0
    # and padded w2 rows contribute nothing).
    w1_p = jnp.pad(w1.astype(jnp.bfloat16),
                   ((0, in_p - in_dim), (0, hid_p - hidden_dim)))
    w2_p = jnp.pad(w2.astype(jnp.bfloat16),
                   ((0, hid_p - hidden_dim), (0, out_p - out_dim)))
    b1_p = jnp.pad(b1.astype(jnp.float32), (0, hid_p - hidden_dim)).reshape(1, hid_p)
    b2_p = jnp.pad(b2.astype(jnp.float32), (0, out_p - out_dim)).reshape(1, out_p)
    return MLPParams(w1_p, b1_p, w2_p, b2_p, in_dim, hidden_dim, out_dim,
                     in_p, hid_p, out_p, th, ktiled)


def mlp_apply(x, p: MLPParams, cfg=None):
    """x: (..., in_dim) -> (..., out_dim) with prepared (padded/bf16) weights."""
    if cfg is None:
        cfg = _hw_config()
    assert x.shape[-1] == p.in_dim
    lead = x.shape[:-1]
    m = 1
    for d in lead:
        m *= d
    m = max(m, 1)

    x_bytes = x.dtype.itemsize
    out_dtype = x.dtype
    out_bytes = jnp.dtype(out_dtype).itemsize

    if p.ktiled:
        tm = _choose_tm_ktiled(p.in_p, p.th, p.out_p, x_bytes, out_bytes, cfg)
    else:
        tm = _choose_tm_resident(p.in_p, p.hid_p, p.out_p, x_bytes, out_bytes, cfg)

    if m <= tm:
        tm = _round_up(m, 8)
    grid_m = pl.cdiv(m, tm)
    # Keep >= 2 M steps where possible so ("parallel", ...) can shard the grid
    # across v7x's two TensorCores (negligible extra step cost on 1-TC chips).
    if grid_m == 1 and tm >= 16:
        tm = _round_up(pl.cdiv(m, 2), 8)
        grid_m = pl.cdiv(m, tm)
    m_pad = grid_m * tm

    x2d = x.reshape(m, p.in_dim)
    if m_pad != m or p.in_p != p.in_dim:
        # Pad only when required; fold the bf16 cast into the same pass.
        x2d = jnp.pad(x2d.astype(jnp.bfloat16),
                      ((0, m_pad - m), (0, p.in_p - p.in_dim)))
    # else: pass x through untouched; the kernel casts to bf16 in-register.

    cost = pl.CostEstimate(
        flops=2 * m_pad * p.hid_p * (p.in_p + p.out_p),
        transcendentals=m_pad * p.hid_p,
        bytes_accessed=(x2d.size * x2d.dtype.itemsize
                        + p.w1.size * p.w1.dtype.itemsize
                        + p.w2.size * p.w2.dtype.itemsize
                        + p.b1.size * 4 + p.b2.size * 4
                        + m_pad * p.out_p * out_bytes),
    )

    if not p.ktiled:
        compiler_params = pltpu.CompilerParams(
            dimension_semantics=("parallel",),
            vmem_limit_bytes=cfg["vmem_limit"],
        )
        out2d = pl.pallas_call(
            _mlp_kernel_resident,
            out_shape=jax.ShapeDtypeStruct((m_pad, p.out_p), out_dtype),
            grid=(grid_m,),
            in_specs=[
                pl.BlockSpec((tm, p.in_p), lambda i: (i, 0)),        # x: tiled over M
                _weight_spec((p.in_p, p.hid_p), lambda i: (0, 0)),   # w1: resident, 1-buffered
                _weight_spec((1, p.hid_p), lambda i: (0, 0)),        # b1
                _weight_spec((p.hid_p, p.out_p), lambda i: (0, 0)),  # w2
                _weight_spec((1, p.out_p), lambda i: (0, 0)),        # b2
            ],
            out_specs=pl.BlockSpec((tm, p.out_p), lambda i: (i, 0)),
            compiler_params=compiler_params,
            cost_estimate=cost,
        )(x2d, p.w1, p.b1, p.w2, p.b2)
    else:
        grid_h = p.hid_p // p.th
        compiler_params = pltpu.CompilerParams(
            dimension_semantics=("parallel", "arbitrary"),
            vmem_limit_bytes=cfg["vmem_limit"],
        )
        out2d = pl.pallas_call(
            _mlp_kernel_ktiled,
            out_shape=jax.ShapeDtypeStruct((m_pad, p.out_p), out_dtype),
            grid=(grid_m, grid_h),
            in_specs=[
                pl.BlockSpec((tm, p.in_p), lambda i, h: (i, 0)),      # x: constant over H
                pl.BlockSpec((p.in_p, p.th), lambda i, h: (0, h)),    # w1 hidden tile
                pl.BlockSpec((1, p.th), lambda i, h: (0, h)),         # b1 hidden tile
                pl.BlockSpec((p.th, p.out_p), lambda i, h: (h, 0)),   # w2 hidden tile
                _weight_spec((1, p.out_p), lambda i, h: (0, 0)),      # b2: resident
            ],
            out_specs=pl.BlockSpec((tm, p.out_p), lambda i, h: (i, 0)),
            scratch_shapes=[pltpu.VMEM((tm, p.out_p), jnp.float32)],
            compiler_params=compiler_params,
            cost_estimate=cost,
        )(x2d, p.w1, p.b1, p.w2, p.b2)

    if m_pad != m or p.out_p != p.out_dim:
        out2d = out2d[:m, :p.out_dim]
    return out2d.reshape(*lead, p.out_dim)


def mlp_pallas(x, w1, b1, w2, b2):
    """Convenience one-shot path (prepare + apply)."""
    cfg = _hw_config()
    return mlp_apply(x, mlp_prepare(w1, b1, w2, b2, cfg), cfg)


# ---------------------------------------------------------------------------
# Reference + init (mirrors the PyTorch module)
# ---------------------------------------------------------------------------

def init_mlp_params(key, in_dim, out_dim=None, hidden_dim=None, dtype=jnp.float32):
    if out_dim is None:
        out_dim = in_dim
    if hidden_dim is None:
        hidden_dim = int(in_dim * 4 * (2 / 3))
    k1, k2, k3, k4 = jax.random.split(key, 4)
    bound1 = 1.0 / (in_dim ** 0.5)
    bound2 = 1.0 / (hidden_dim ** 0.5)
    w1 = jax.random.uniform(k1, (in_dim, hidden_dim), dtype, -bound1, bound1)
    b1 = jax.random.uniform(k2, (hidden_dim,), dtype, -bound1, bound1)
    w2 = jax.random.uniform(k3, (hidden_dim, out_dim), dtype, -bound2, bound2)
    b2 = jax.random.uniform(k4, (out_dim,), dtype, -bound2, bound2)
    return w1, b1, w2, b2


def _mlp_ref(x, w1, b1, w2, b2):
    h = x @ w1 + b1
    h = h * jax.nn.sigmoid(h)
    return h @ w2 + b2   # Dropout in eval mode is identity


if __name__ == "__main__":
    key = jax.random.PRNGKey(0)
    kx, kp = jax.random.split(key)

    # Small shapes implied by the module: batch=2, seq=8, in_dim=32.
    batch, seq, in_dim = 2, 8, 32
    x = jax.random.normal(kx, (batch, seq, in_dim), dtype=jnp.float32)

    w1, b1, w2, b2 = init_mlp_params(kp, in_dim)   # hidden = int(32*4*2/3) = 85

    params = mlp_prepare(w1, b1, w2, b2)           # pad/cast hoisted out of the hot path
    out = jax.block_until_ready(mlp_apply(x, params))

    ref = _mlp_ref(x, w1, b1, w2, b2)
    assert out.shape == (batch, seq, in_dim), out.shape   # out_dim defaults to in_dim
    err = float(jnp.max(jnp.abs(out - ref)))
    # bf16 matmul operands (f32 accumulation) vs. f32 reference: loosened tolerance.
    assert jnp.allclose(out, ref, atol=5e-2, rtol=5e-2), err
    print("KERNEL_OK")
</pallas_src>

<mosaic_0001>
module attributes {stable_mosaic.version = 11 : i64} {
  func.func @_mlp_kernel_resident(%arg0: i32, %arg1: memref<8x128xbf16, #tpu.memory_space<vmem>>, %arg2: memref<128x128xbf16, #tpu.memory_space<vmem>>, %arg3: memref<1x128xf32, #tpu.memory_space<vmem>>, %arg4: memref<128x128xbf16, #tpu.memory_space<vmem>>, %arg5: memref<1x128xf32, #tpu.memory_space<vmem>>, %arg6: memref<8x128xf32, #tpu.memory_space<vmem>>) attributes {dimension_semantics = [#tpu.dimension_semantics<parallel>], iteration_bounds = array<i64: 2>, scalar_prefetch = 0 : i64, scratch_operands = 0 : i64, tpu.core_type = #tpu.core_type<tc>, window_params = [{transform_indices = @transform_0, window_bounds = array<i64: 8, 128>}, {pipeline_mode = #tpu.pipeline_mode<synchronous>, transform_indices = @transform_1, window_bounds = array<i64: 128, 128>}, {pipeline_mode = #tpu.pipeline_mode<synchronous>, transform_indices = @transform_2, window_bounds = array<i64: 1, 128>}, {pipeline_mode = #tpu.pipeline_mode<synchronous>, transform_indices = @transform_3, window_bounds = array<i64: 128, 128>}, {pipeline_mode = #tpu.pipeline_mode<synchronous>, transform_indices = @transform_4, window_bounds = array<i64: 1, 128>}, {transform_indices = @transform_5, window_bounds = array<i64: 8, 128>}]} {
    %c0 = arith.constant 0 : index
    %c0_0 = arith.constant 0 : index
    %0 = vector.load %arg1[%c0, %c0_0] : memref<8x128xbf16, #tpu.memory_space<vmem>>, vector<8x128xbf16>
    %c0_1 = arith.constant 0 : index
    %c0_2 = arith.constant 0 : index
    %1 = vector.load %arg2[%c0_1, %c0_2] : memref<128x128xbf16, #tpu.memory_space<vmem>>, vector<128x128xbf16>
    %cst = arith.constant dense<0.000000e+00> : vector<8x128xf32>
    %2 = tpu.matmul %0, %1, %cst {dimension_numbers = #tpu.dot_dimension_numbers<[1], [0], [0], [1], [0, 0, 1, 1], [], []>} : vector<8x128xbf16>, vector<128x128xbf16>, vector<8x128xf32> -> vector<8x128xf32>
    %c0_3 = arith.constant 0 : index
    %c0_4 = arith.constant 0 : index
    %3 = vector.load %arg3[%c0_3, %c0_4] : memref<1x128xf32, #tpu.memory_space<vmem>>, vector<1x128xf32>
    %4 = vector.broadcast %3 : vector<1x128xf32> to vector<8x128xf32>
    %5 = arith.addf %2, %4 : vector<8x128xf32>
    %6 = arith.negf %5 : vector<8x128xf32>
    %7 = math.exp %6 : vector<8x128xf32>
    %cst_5 = arith.constant 1.000000e+00 : f32
    %8 = vector.broadcast %cst_5 : f32 to vector<8x128xf32>
    %9 = arith.addf %8, %7 : vector<8x128xf32>
    %10 = arith.divf %8, %9 : vector<8x128xf32>
    %11 = arith.mulf %5, %10 : vector<8x128xf32>
    %12 = arith.truncf %11 : vector<8x128xf32> to vector<8x128xbf16>
    %c0_6 = arith.constant 0 : index
    %c0_7 = arith.constant 0 : index
    %13 = vector.load %arg4[%c0_6, %c0_7] : memref<128x128xbf16, #tpu.memory_space<vmem>>, vector<128x128xbf16>
    %cst_8 = arith.constant dense<0.000000e+00> : vector<8x128xf32>
    %14 = tpu.matmul %12, %13, %cst_8 {dimension_numbers = #tpu.dot_dimension_numbers<[1], [0], [0], [1], [0, 0, 1, 1], [], []>} : vector<8x128xbf16>, vector<128x128xbf16>, vector<8x128xf32> -> vector<8x128xf32>
    %c0_9 = arith.constant 0 : index
    %c0_10 = arith.constant 0 : index
    %15 = vector.load %arg5[%c0_9, %c0_10] : memref<1x128xf32, #tpu.memory_space<vmem>>, vector<1x128xf32>
    %16 = vector.broadcast %15 : vector<1x128xf32> to vector<8x128xf32>
    %17 = arith.addf %14, %16 : vector<8x128xf32>
    %c0_11 = arith.constant 0 : index
    %c0_12 = arith.constant 0 : index
    %18 = vector.load %arg6[%c0_11, %c0_12] : memref<8x128xf32, #tpu.memory_space<vmem>>, vector<8x128xf32>
    tpu.vector_store %arg6[%c0_11, %c0_12], %17 {strides = array<i32>} : memref<8x128xf32, #tpu.memory_space<vmem>>, vector<8x128xf32>,
    return
  }
  func.func @transform_0(%arg0: i32) -> (i32, i32) {
    %c0_i32 = arith.constant 0 : i32
    %c0_i32_0 = arith.constant 0 : i32
    return %arg0, %c0_i32 : i32, i32
  }
  func.func @transform_1(%arg0: i32) -> (i32, i32) {
    %c0_i32 = arith.constant 0 : i32
    %c0_i32_0 = arith.constant 0 : i32
    %c0_i32_1 = arith.constant 0 : i32
    return %c0_i32, %c0_i32_0 : i32, i32
  }
  func.func @transform_2(%arg0: i32) -> (i32, i32) {
    %c0_i32 = arith.constant 0 : i32
    %c0_i32_0 = arith.constant 0 : i32
    %c0_i32_1 = arith.constant 0 : i32
    return %c0_i32, %c0_i32_0 : i32, i32
  }
  func.func @transform_3(%arg0: i32) -> (i32, i32) {
    %c0_i32 = arith.constant 0 : i32
    %c0_i32_0 = arith.constant 0 : i32
    %c0_i32_1 = arith.constant 0 : i32
    return %c0_i32, %c0_i32_0 : i32, i32
  }
  func.func @transform_4(%arg0: i32) -> (i32, i32) {
    %c0_i32 = arith.constant 0 : i32
    %c0_i32_0 = arith.constant 0 : i32
    %c0_i32_1 = arith.constant 0 : i32
    return %c0_i32, %c0_i32_0 : i32, i32
  }
  func.func @transform_5(%arg0: i32) -> (i32, i32) {
    %c0_i32 = arith.constant 0 : i32
    %c0_i32_0 = arith.constant 0 : i32
    return %arg0, %c0_i32 : i32, i32
  }
}

</mosaic_0001>

<llo_original>
// kernel: tpu_custom_call.1
$region0: #{tpu_custom_call.1}
  #allocation0 [shape = 'u32[]', space=smem, size = 0x4, offset = 0x4, fixed_abs, tag = 'smem constant byte address 0x4 - core index']
  #allocation1 [shape = 'u32[72,128]{1,0:T(1,128)}', space=vmem, size = 0x9000, scoped, tag = 'internal scratch']
  %s0 = inlined_call_operand.hbm [shape: bf16[16,128], index: 0, kind: input, shape index: {}]
  %s1 = inlined_call_operand.hbm [shape: bf16[128,128], index: 1, kind: input, shape index: {}]
  %s2 = inlined_call_operand.vmem [shape: f32[1,128], index: 2, kind: input, shape index: {}]
  %s3 = inlined_call_operand.hbm [shape: bf16[128,128], index: 3, kind: input, shape index: {}]
  %s4 = inlined_call_operand.vmem [shape: f32[1,128], index: 4, kind: input, shape index: {}]
  %s5 = inlined_call_operand.hbm [shape: f32[16,128], index: 5, kind: output, shape index: {}]
  %s6 = sld [smem:[#allocation0]]
  $region65: #{tpu_custom_call.1} parent=0
    _
  %s8 = ssub.s32 1, %s6
  %s9 = scalar_select 0, %s8, %s6
  $region1: #{tpu_custom_call.1} parent=0
    #allocation2 [shape = 'u8[4096]{0}', space=vmem, size = 0x1000, scoped, tag = 'input window, operand 0']
    #allocation3 [shape = 's32[2]{0}', space=sflag, size = 0x8, scoped, tag = 'scoped memory for tpu_custom_call.1']
    #allocation4 [shape = 's32[2]{0}', space=sflag, size = 0x8, scoped, tag = 'scoped memory for tpu_custom_call.1']
    #allocation5 [shape = 'u8[32768]{0}', space=vmem, size = 0x8000, scoped, tag = 'input window, operand 1, single buffered']
    #allocation6 [shape = 's32[1]{0}', space=sflag, size = 0x4, scoped, tag = 'scoped memory for tpu_custom_call.1']
    #allocation7 [shape = 'u8[32768]{0}', space=vmem, size = 0x8000, scoped, tag = 'input window, operand 3, single buffered']
    #allocation8 [shape = 'u8[8192]{0}', space=vmem, size = 0x2000, scoped, tag = 'output window, operand 0']
    %10 = vsyncpa [#allocation3], 0
    %s11 = scalar_lea.sflag [#allocation3], 1
    %12 = vsyncpa %s11, 0
    %13 = vsyncpa [#allocation6], 0
    %14 = vsyncpa [#allocation4], 0
    %s15 = scalar_lea.sflag [#allocation4], 1
    %16 = vsyncpa %s15, 0
    loop: start=0, step=1, limit=4
    $region2: #{tpu_custom_call.1} parent=1 // loop_pre_header
      _
    $region3: #{tpu_custom_call.1} parent=1 // loop_header
      %s18 = sphi 0, %s22
      %p19 = scmp.ge.s32.totalorder %s18, 4
      %s28 = sphi 0, %s30
      %s31 = sphi 0, %s28
      %s32 = sphi 0, %s31
      %s48 = sphi 0, %s32
      %s52 = sphi 0, %s52
      %s54 = sphi 0, %s52
      %s55 = sphi 0, %s54
      %s69 = sphi 0, %s55
      %s73 = sphi 0, %s73
      %s75 = sphi 0, %s73
      %s76 = sphi 0, %s75
      %s90 = sphi 0, %s76
      %s94 = sphi 0, %s94
      %s96 = sphi 0, %s94
      %s97 = sphi 0, %s96
      %s111 = sphi 0, %s97
      %s115 = sphi 0, %s115
      %s117 = sphi 0, %s115
      %s118 = sphi 0, %s117
      %s132 = sphi 0, %s118
      %s138 = sphi 0, %s140
      %s141 = sphi 0, %s138
      %s142 = sphi 0, %s141
      %s158 = sphi 0, %s142
    $region4: #{tpu_custom_call.1} parent=1 // loop_header_branch
      %21 = sbr.rel (%p19) target = $region8
    $region5: #{tpu_custom_call.1} parent=1 // loop_body
      %s23 = ssub.s32 %s18, 1
      %s24 = ssub.s32 %s18, 2
      %s25 = sadd.s32 %s18, 1
      %s26 = ssub.s32 %s18, %s25
      %p27 = scmp.eq.s32.totalorder %s26, 0
      %s29 = sadd.s32 %s28, 1
      %s30 = scalar_select %p27, %s28, %s29
      %p33 = pneg %p27
      %p34 = scmp.eq.s32.totalorder %s18, 1
      %p35 = por %p33, %p34
      %p36 = scmp.ne.s32.totalorder %s28, %s31
      %p37 = scmp.eq.s32.totalorder %s18, 0
      %p38 = por %p36, %p37
      %p39 = scmp.ne.s32.totalorder %s28, %s31
      %p40 = scmp.eq.s32.totalorder %s23, 1
      %p41 = por %p39, %p40
      %p42 = scmp.ne.s32.totalorder %s31, %s32
      %p43 = scmp.eq.s32.totalorder %s23, 0
      %p44 = por %p42, %p43
      %p45 = scmp.ne.s32.totalorder %s31, %s32
      %p46 = scmp.eq.s32.totalorder %s24, 1
      %p47 = por %p45, %p46
      %p49 = scmp.ne.s32.totalorder %s32, %s48
      %p50 = scmp.eq.s32.totalorder %s24, 0
      %p51 = por %p49, %p50
      %s53 = sadd.s32 %s52, 1
      %p56 = scmp.eq.s32.totalorder %s18, 1
      %p57 = scmp.ne.s32.totalorder %s52, %s54
      %p58 = scmp.eq.s32.totalorder %s18, 0
      %p59 = por %p57, %p58
      %p60 = scmp.ne.s32.totalorder %s52, %s54
      %p61 = scmp.eq.s32.totalorder %s23, 1
      %p62 = por %p60, %p61
      %p63 = scmp.ne.s32.totalorder %s54, %s55
      %p64 = scmp.eq.s32.totalorder %s23, 0
      %p65 = por %p63, %p64
      %p66 = scmp.ne.s32.totalorder %s54, %s55
      %p67 = scmp.eq.s32.totalorder %s24, 1
      %p68 = por %p66, %p67
      %p70 = scmp.ne.s32.totalorder %s55, %s69
      %p71 = scmp.eq.s32.totalorder %s24, 0
      %p72 = por %p70, %p71
      %s74 = sadd.s32 %s73, 1
      %p77 = scmp.eq.s32.totalorder %s18, 1
      %p78 = scmp.ne.s32.totalorder %s73, %s75
      %p79 = scmp.eq.s32.totalorder %s18, 0
      %p80 = por %p78, %p79
      %p81 = scmp.ne.s32.totalorder %s73, %s75
      %p82 = scmp.eq.s32.totalorder %s23, 1
      %p83 = por %p81, %p82
      %p84 = scmp.ne.s32.totalorder %s75, %s76
      %p85 = scmp.eq.s32.totalorder %s23, 0
      %p86 = por %p84, %p85
      %p87 = scmp.ne.s32.totalorder %s75, %s76
      %p88 = scmp.eq.s32.totalorder %s24, 1
      %p89 = por %p87, %p88
      %p91 = scmp.ne.s32.totalorder %s76, %s90
      %p92 = scmp.eq.s32.totalorder %s24, 0
      %p93 = por %p91, %p92
      %s95 = sadd.s32 %s94, 1
      %p98 = scmp.eq.s32.totalorder %s18, 1
      %p99 = scmp.ne.s32.totalorder %s94, %s96
      %p100 = scmp.eq.s32.totalorder %s18, 0
      %p101 = por %p99, %p100
      %p102 = scmp.ne.s32.totalorder %s94, %s96
      %p103 = scmp.eq.s32.totalorder %s23, 1
      %p104 = por %p102, %p103
      %p105 = scmp.ne.s32.totalorder %s96, %s97
      %p106 = scmp.eq.s32.totalorder %s23, 0
      %p107 = por %p105, %p106
      %p108 = scmp.ne.s32.totalorder %s96, %s97
      %p109 = scmp.eq.s32.totalorder %s24, 1
      %p110 = por %p108, %p109
      %p112 = scmp.ne.s32.totalorder %s97, %s111
      %p113 = scmp.eq.s32.totalorder %s24, 0
      %p114 = por %p112, %p113
      %s116 = sadd.s32 %s115, 1
      %p119 = scmp.eq.s32.totalorder %s18, 1
      %p120 = scmp.ne.s32.totalorder %s115, %s117
      %p121 = scmp.eq.s32.totalorder %s18, 0
      %p122 = por %p120, %p121
      %p123 = scmp.ne.s32.totalorder %s115, %s117
      %p124 = scmp.eq.s32.totalorder %s23, 1
      %p125 = por %p123, %p124
      %p126 = scmp.ne.s32.totalorder %s117, %s118
      %p127 = scmp.eq.s32.totalorder %s23, 0
      %p128 = por %p126, %p127
      %p129 = scmp.ne.s32.totalorder %s117, %s118
      %p130 = scmp.eq.s32.totalorder %s24, 1
      %p131 = por %p129, %p130
      %p133 = scmp.ne.s32.totalorder %s118, %s132
      %p134 = scmp.eq.s32.totalorder %s24, 0
      %p135 = por %p133, %p134
      %s136 = ssub.s32 %s18, %s25
      %p137 = scmp.eq.s32.totalorder %s136, 0
      %s139 = sadd.s32 %s138, 1
      %s140 = scalar_select %p137, %s138, %s139
      %p143 = pneg %p137
      %p144 = scmp.eq.s32.totalorder %s18, 1
      %p145 = por %p143, %p144
      %p146 = scmp.ne.s32.totalorder %s138, %s141
      %p147 = scmp.eq.s32.totalorder %s18, 0
      %p148 = por %p146, %p147
      %p149 = scmp.ne.s32.totalorder %s138, %s141
      %p150 = scmp.eq.s32.totalorder %s23, 1
      %p151 = por %p149, %p150
      %p152 = scmp.ne.s32.totalorder %s141, %s142
      %p153 = scmp.eq.s32.totalorder %s23, 0
      %p154 = por %p152, %p153
      %p155 = scmp.ne.s32.totalorder %s141, %s142
      %p156 = scmp.eq.s32.totalorder %s24, 1
      %p157 = por %p155, %p156
      %p159 = scmp.ne.s32.totalorder %s142, %s158
      %p160 = scmp.eq.s32.totalorder %s24, 0
      %p161 = por %p159, %p160
      %p162 = scmp.le.s32.totalorder 1, %s18
      %p163 = scmp.lt.s32.totalorder %s18, 3
      %p164 = pnand %p162, %p163
      %p165 = pneg %p164
      // Predicated region
      $region9: #{tpu_custom_call.1} parent=5 // pred_check
        _
      $region10: #{tpu_custom_call.1} parent=5 // pred_check_branch
        %167 = sbr.rel (%p164) target = $region12
      $region11: #{tpu_custom_call.1} parent=5 // pred_region
        %s168 = ssub.s32 %s18, 1
        // Predicated region
        $region13: #{tpu_custom_call.1} parent=11 // pred_check
          %p169 = pneg %p65
        $region14: #{tpu_custom_call.1} parent=11 // pred_check_branch
          %171 = sbr.rel (%p169) target = $region16
        $region15: #{tpu_custom_call.1} parent=11 // pred_region
          %173 = vsyncadd [#allocation6], 0
          %s174 = sshll.u32 %s1, 4
          %s175 = int_to_ptr.hbm [resolvable:$true] %s174
          %s176 = sshll.u32 [#allocation5], 4
          %s177 = int_to_ptr.vmem [resolvable:$true] %s176
          %182 = dma.hbm_to_vmem [thread:$0]  %s175, 1024, %s177, [#allocation6], 64, 64, 4
        $region16: #{tpu_custom_call.1} parent=11 // pred_fallthru
          _
        // Predicated region
        $region17: #{tpu_custom_call.1} parent=11 // pred_check
          %p183 = pneg %p86
        $region18: #{tpu_custom_call.1} parent=11 // pred_check_branch
          %185 = sbr.rel (%p183) target = $region20
        $region19: #{tpu_custom_call.1} parent=11 // pred_region
          _
        $region20: #{tpu_custom_call.1} parent=11 // pred_fallthru
          _
        // Predicated region
        $region21: #{tpu_custom_call.1} parent=11 // pred_check
          %p186 = pneg %p107
        $region22: #{tpu_custom_call.1} parent=11 // pred_check_branch
          %188 = sbr.rel (%p186) target = $region24
        $region23: #{tpu_custom_call.1} parent=11 // pred_region
          %190 = vsyncadd [#allocation6], 0
          %s191 = sshll.u32 %s3, 4
          %s192 = int_to_ptr.hbm [resolvable:$true] %s191
          %s193 = sshll.u32 [#allocation7], 4
          %s194 = int_to_ptr.vmem [resolvable:$true] %s193
          %199 = dma.hbm_to_vmem [thread:$0]  %s192, 1024, %s194, [#allocation6], 64, 64, 4
        $region24: #{tpu_custom_call.1} parent=11 // pred_fallthru
          _
        // Predicated region
        $region25: #{tpu_custom_call.1} parent=11 // pred_check
          %p200 = pneg %p128
        $region26: #{tpu_custom_call.1} parent=11 // pred_check_branch
          %202 = sbr.rel (%p200) target = $region28
        $region27: #{tpu_custom_call.1} parent=11 // pred_region
          _
        $region28: #{tpu_custom_call.1} parent=11 // pred_fallthru
          _
      $region12: #{tpu_custom_call.1} parent=5 // pred_fallthru
        _
      %p203 = scmp.lt.s32.totalorder %s18, 2
      // Predicated region
      $region29: #{tpu_custom_call.1} parent=5 // pred_check
        %p204 = pneg %p203
      $region30: #{tpu_custom_call.1} parent=5 // pred_check_branch
        %206 = sbr.rel (%p204) target = $region32
      $region31: #{tpu_custom_call.1} parent=5 // pred_region
        // Predicated region
        $region33: #{tpu_custom_call.1} parent=31 // pred_check
          %p207 = pneg %p38
        $region34: #{tpu_custom_call.1} parent=31 // pred_check_branch
          %209 = sbr.rel (%p207) target = $region36
        $region35: #{tpu_custom_call.1} parent=31 // pred_region
          %s210 = sand.u32 %s28, 1
          %s211 = scalar_lea.sflag [#allocation3], %s210
          %s212 = sand.u32 %s28, 1
          %s213 = smul.addr %s212, 4
          %s214 = scalar_lea.vmem [#allocation2], %s213
          %216 = vsyncadd %s211, 0
          %s217 = smul.addr %s18, 4
          %s218 = scalar_lea.hbm %s0, %s217
          %s220 = sshll.u32 %s218, 4
          %s221 = int_to_ptr.hbm [resolvable:$true] %s220
          %s222 = sshll.u32 %s214, 4
          %s223 = int_to_ptr.vmem [resolvable:$true] %s222
          %225 = dma.hbm_to_vmem [thread:$0]  %s221, 64, %s223, %s211
        $region36: #{tpu_custom_call.1} parent=31 // pred_fallthru
          _
      $region32: #{tpu_custom_call.1} parent=5 // pred_fallthru
        _
      %p226 = scmp.le.s32.totalorder 1, %s18
      %p227 = scmp.lt.s32.totalorder %s18, 3
      %p228 = pnand %p226, %p227
      %p229 = pneg %p228
      // Predicated region
      $region37: #{tpu_custom_call.1} parent=5 // pred_check
        _
      $region38: #{tpu_custom_call.1} parent=5 // pred_check_branch
        %231 = sbr.rel (%p228) target = $region40
      $region39: #{tpu_custom_call.1} parent=5 // pred_region
        %s232 = ssub.s32 %s18, 1
        %s233 = sand.u32 %s31, 1
        %s234 = scalar_lea.sflag [#allocation3], %s233
        %s235 = sand.u32 %s31, 1
        %s236 = smul.addr %s235, 4
        %s237 = scalar_lea.vmem [#allocation2], %s236
        // Predicated region
        $region41: #{tpu_custom_call.1} parent=39 // pred_check
          %p238 = pneg %p44
        $region42: #{tpu_custom_call.1} parent=39 // pred_check_branch
          %240 = sbr.rel (%p238) target = $region44
        $region43: #{tpu_custom_call.1} parent=39 // pred_region
          %242 = dma.done %s234, 64
        $region44: #{tpu_custom_call.1} parent=39 // pred_fallthru
          _
        // Predicated region
        $region45: #{tpu_custom_call.1} parent=39 // pred_check
          %p243 = pneg %p65
        $region46: #{tpu_custom_call.1} parent=39 // pred_check_branch
          %245 = sbr.rel (%p243) target = $region48
        $region47: #{tpu_custom_call.1} parent=39 // pred_region
          %247 = dma.done [#allocation6], 1024
        $region48: #{tpu_custom_call.1} parent=39 // pred_fallthru
          _
        // Predicated region
        $region49: #{tpu_custom_call.1} parent=39 // pred_check
          %p248 = pneg %p107
        $region50: #{tpu_custom_call.1} parent=39 // pred_check_branch
          %250 = sbr.rel (%p248) target = $region52
        $region51: #{tpu_custom_call.1} parent=39 // pred_region
          %252 = dma.done [#allocation6], 1024
        $region52: #{tpu_custom_call.1} parent=39 // pred_fallthru
          _
        %s253 = sand.u32 %s31, 1
        %s254 = scalar_lea.sflag [#allocation3], %s253
        %s255 = sand.u32 %s31, 1
        %s256 = smul.addr %s255, 4
        %s257 = scalar_lea.vmem [#allocation2], %s256
        %p258 = pneg %p44
        %p259 = pneg %p41
        %p260 = pneg %p65
        %p261 = pneg %p62
        %p262 = pneg %p86
        %p263 = pneg %p83
        %p264 = pneg %p107
        %p265 = pneg %p104
        %p266 = pneg %p128
        %p267 = pneg %p125
        %p268 = pneg %p154
        %p269 = pneg %p151
        %s270 = sand.u32 %s141, 1
        %s271 = scalar_lea.sflag [#allocation4], %s270
        %s272 = sand.u32 %s141, 1
        %s273 = smul.addr %s272, 8
        %s274 = scalar_lea.vmem [#allocation8], %s273
        %v275 = vld [vmem:[%s237] sm:$0xf]
        %v276 = vld [vmem:[#allocation5] sm:$0xf]
        %v277 = vld [vmem:[#allocation5 + $0x4] sm:$0xf]
        %v278 = vld [vmem:[#allocation5 + $0x8] sm:$0xf]
        %v279 = vld [vmem:[#allocation5 + $0xc] sm:$0xf]
        %v280 = vld [vmem:[#allocation5 + $0x10] sm:$0xf]
        %v281 = vld [vmem:[#allocation5 + $0x14] sm:$0xf]
        %v282 = vld [vmem:[#allocation5 + $0x18] sm:$0xf]
        %v283 = vld [vmem:[#allocation5 + $0x1c] sm:$0xf]
        %v284 = vld [vmem:[#allocation5 + $0x20] sm:$0xf]
        %v285 = vld [vmem:[#allocation5 + $0x24] sm:$0xf]
        %v286 = vld [vmem:[#allocation5 + $0x28] sm:$0xf]
        %v287 = vld [vmem:[#allocation5 + $0x2c] sm:$0xf]
        %v288 = vld [vmem:[#allocation5 + $0x30] sm:$0xf]
        %v289 = vld [vmem:[#allocation5 + $0x34] sm:$0xf]
        %v290 = vld [vmem:[#allocation5 + $0x38] sm:$0xf]
        %v291 = vld [vmem:[#allocation5 + $0x3c] sm:$0xf]
        %v292 = vld [vmem:[%s2] sm:$0x1]
        %v294 = vperm.slane %v292, 0
        %v312 = vunpack.c.l.b16 %v276
        %v313 = vunpack.c.l.b16 %v277
        %v314 = vunpack.c.l.b16 %v278
        %v315 = vunpack.c.l.b16 %v279
        %v316 = vunpack.c.l.b16 %v280
        %v317 = vunpack.c.l.b16 %v281
        %v318 = vunpack.c.l.b16 %v282
        %v319 = vunpack.c.l.b16 %v283
        %v320 = vunpack.c.l.b16 %v284
        %v321 = vunpack.c.l.b16 %v285
        %v322 = vunpack.c.l.b16 %v286
        %v323 = vunpack.c.l.b16 %v287
        %v324 = vunpack.c.l.b16 %v288
        %v325 = vunpack.c.l.b16 %v289
        %v326 = vunpack.c.l.b16 %v290
        %v327 = vunpack.c.l.b16 %v291
        %v328 = vpack.c.b16 %v313, %v312
        %v329 = vpack.c.b16 %v315, %v314
        %v330 = vpack.c.b16 %v317, %v316
        %v331 = vpack.c.b16 %v319, %v318
        %v332 = vpack.c.b16 %v321, %v320
        %v333 = vpack.c.b16 %v323, %v322
        %v334 = vpack.c.b16 %v325, %v324
        %v335 = vpack.c.b16 %v327, %v326
        %344 = vmatpush.bf16.msra.mxu0 %v335
        %345 = vmatpush.bf16.msra.mxu0 %v334
        %346 = vmatpush.bf16.msra.mxu0 %v333
        %347 = vmatpush.bf16.msra.mxu0 %v332
        %348 = vmatpush.bf16.msra.mxu0 %v331
        %349 = vmatpush.bf16.msra.mxu0 %v330
        %350 = vmatpush.bf16.msra.mxu0 %v329
        %351 = vmatpush.bf16.msra.mxu0 %v328
        %352 = vmatmul.bf16.gmra.mxu0 %v275
        %v353 = vpop.f32.mrf.mxu0
        %v354 = vadd.f32 %v294, %v353
        %v355 = vpop.f32.mrf.mxu0
        %356 = vdwg.mxu0
        %v357 = vxor.u32 %v354, 2147483648
        %v358 = vmul.f32 %v357, 1.442695
        %v359 = vpow.pop %v358
        %v360 = vadd.f32 %v359, 1.0
        %v361 = vrcp.pop %v360
        %v362 = vmul.f32 %v360, %v361
        %v363 = vsub.f32 1.0, %v362
        %v364 = vmul.f32 %v361, %v363
        %v365 = vadd.f32 %v361, %v364
        %vm366 = vweird.f32 %v360
        %vm367 = vweird.f32 %v361
        %vm368 = vmor %vm366, %vm367
        %v369 = vsel %vm368, %v361, %v365
        %v370 = vand.u32 2147483647, %v360
        %vm371 = vcmp.eq.f32.partialorder %v370, 8.507059e+37
        %v372 = vand.u32 %v360, 2147483648
        %v373 = vor.u32 1.1754944e-38, %v372
        %v374 = vsel %vm371, %v373, %v369
        %v375 = vmul.f32 1.0, %v374
        %v376 = vmul.f32 %v354, %v375
        %v377 = vpack.c.bf16 %v376, %v376
        %v378 = vld [vmem:[#allocation7] sm:$0xf]
        %v379 = vld [vmem:[#allocation7 + $0x4] sm:$0xf]
        %v380 = vld [vmem:[#allocation7 + $0x8] sm:$0xf]
        %v381 = vld [vmem:[#allocation7 + $0xc] sm:$0xf]
        %v382 = vld [vmem:[#allocation7 + $0x10] sm:$0xf]
        %v383 = vld [vmem:[#allocation7 + $0x14] sm:$0xf]
        %v384 = vld [vmem:[#allocation7 + $0x18] sm:$0xf]
        %v385 = vld [vmem:[#allocation7 + $0x1c] sm:$0xf]
        %v386 = vld [vmem:[#allocation7 + $0x20] sm:$0xf]
        %v387 = vld [vmem:[#allocation7 + $0x24] sm:$0xf]
        %v388 = vld [vmem:[#allocation7 + $0x28] sm:$0xf]
        %v389 = vld [vmem:[#allocation7 + $0x2c] sm:$0xf]
        %v390 = vld [vmem:[#allocation7 + $0x30] sm:$0xf]
        %v391 = vld [vmem:[#allocation7 + $0x34] sm:$0xf]
        %v392 = vld [vmem:[#allocation7 + $0x38] sm:$0xf]
        %v393 = vld [vmem:[#allocation7 + $0x3c] sm:$0xf]
        %v394 = vld [vmem:[%s4] sm:$0x1]
        %v396 = vperm.slane %v394, 0
        %v414 = vunpack.c.l.b16 %v378
        %v415 = vunpack.c.l.b16 %v379
        %v416 = vunpack.c.l.b16 %v380
        %v417 = vunpack.c.l.b16 %v381
        %v418 = vunpack.c.l.b16 %v382
        %v419 = vunpack.c.l.b16 %v383
        %v420 = vunpack.c.l.b16 %v384
        %v421 = vunpack.c.l.b16 %v385
        %v422 = vunpack.c.l.b16 %v386
        %v423 = vunpack.c.l.b16 %v387
        %v424 = vunpack.c.l.b16 %v388
        %v425 = vunpack.c.l.b16 %v389
        %v426 = vunpack.c.l.b16 %v390
        %v427 = vunpack.c.l.b16 %v391
        %v428 = vunpack.c.l.b16 %v392
        %v429 = vunpack.c.l.b16 %v393
        %v430 = vpack.c.b16 %v415, %v414
        %v431 = vpack.c.b16 %v417, %v416
        %v432 = vpack.c.b16 %v419, %v418
        %v433 = vpack.c.b16 %v421, %v420
        %v434 = vpack.c.b16 %v423, %v422
        %v435 = vpack.c.b16 %v425, %v424
        %v436 = vpack.c.b16 %v427, %v426
        %v437 = vpack.c.b16 %v429, %v428
        %446 = vmatpush.bf16.msra.mxu0 %v437
        %447 = vmatpush.bf16.msra.mxu0 %v436
        %448 = vmatpush.bf16.msra.mxu0 %v435
        %449 = vmatpush.bf16.msra.mxu0 %v434
        %450 = vmatpush.bf16.msra.mxu0 %v433
        %451 = vmatpush.bf16.msra.mxu0 %v432
        %452 = vmatpush.bf16.msra.mxu0 %v431
        %453 = vmatpush.bf16.msra.mxu0 %v430
        %454 = vmatmul.bf16.gmra.mxu0 %v377
        %v455 = vpop.f32.mrf.mxu0
        %v456 = vadd.f32 %v396, %v455
        %v457 = vpop.f32.mrf.mxu0
        %458 = vdwg.mxu0
        %459 = vst [vmem:[%s274] sm:$0xff] %v456
        %s460 = sand.u32 %s141, 1
        %s461 = scalar_lea.sflag [#allocation4], %s460
        %s462 = sand.u32 %s141, 1
        %s463 = smul.addr %s462, 8
        %s464 = scalar_lea.vmem [#allocation8], %s463
        // Predicated region
        $region53: #{tpu_custom_call.1} parent=39 // pred_check
          %p465 = pneg %p151
        $region54: #{tpu_custom_call.1} parent=39 // pred_check_branch
          %467 = sbr.rel (%p465) target = $region56
        $region55: #{tpu_custom_call.1} parent=39 // pred_region
          %469 = vsyncadd %s461, 0
          %s470 = smul.addr %s23, 8
          %s471 = scalar_lea.hbm %s5, %s470
          %s473 = sshll.u32 %s464, 4
          %s474 = int_to_ptr.vmem [resolvable:$true] %s473
          %s475 = sshll.u32 %s471, 4
          %s476 = int_to_ptr.hbm [resolvable:$true] %s475
          %478 = dma.vmem_to_hbm [thread:$0]  %s474, 128, %s476, %s461
        $region56: #{tpu_custom_call.1} parent=39 // pred_fallthru
          _
      $region40: #{tpu_custom_call.1} parent=5 // pred_fallthru
        _
      %p479 = scmp.le.s32.totalorder 2, %s18
      // Predicated region
      $region57: #{tpu_custom_call.1} parent=5 // pred_check
        %p480 = pneg %p479
      $region58: #{tpu_custom_call.1} parent=5 // pred_check_branch
        %482 = sbr.rel (%p480) target = $region60
      $region59: #{tpu_custom_call.1} parent=5 // pred_region
        %s483 = ssub.s32 %s18, 2
        // Predicated region
        $region61: #{tpu_custom_call.1} parent=59 // pred_check
          %p484 = pneg %p157
        $region62: #{tpu_custom_call.1} parent=59 // pred_check_branch
          %486 = sbr.rel (%p484) target = $region64
        $region63: #{tpu_custom_call.1} parent=59 // pred_region
          %s487 = sand.u32 %s142, 1
          %s488 = scalar_lea.sflag [#allocation4], %s487
          %s489 = sand.u32 %s142, 1
          %s490 = smul.addr %s489, 8
          %s491 = scalar_lea.vmem [#allocation8], %s490
          %493 = dma.done %s488, 128
        $region64: #{tpu_custom_call.1} parent=59 // pred_fallthru
          _
      $region60: #{tpu_custom_call.1} parent=5 // pred_fallthru
        _
    $region6: #{tpu_custom_call.1} parent=1 // loop_footer
      %s22 = sadd.s32 1, %s18
    $region7: #{tpu_custom_call.1} parent=1 // loop_footer_branch
      %17 = sbr.rel target = $region3
    $region8: #{tpu_custom_call.1} parent=1 // loop_exit
      _
    %494 = vsyncpa [#allocation3], 1
    %s495 = scalar_lea.sflag [#allocation3], 1
    %496 = vsyncpa %s495, 1
    %497 = vsyncpa [#allocation6], 1
    %498 = vsyncpa [#allocation4], 1
    %s499 = scalar_lea.sflag [#allocation4], 1
    %500 = vsyncpa %s499, 1

</llo_original>
